<compile_context>
chip_gen: v6e
topology: v6e:2x2x1
jax: 0.10.0
libtpu: 0.0.40
codegen_flags: <defaults>
</compile_context>

<pallas_src>
import functools

import jax
import jax.numpy as jnp
from jax.experimental import pallas as pl
from jax.experimental.pallas import tpu as pltpu


def base_mlp_kernel(obs_ref, mask_ref, expand_ref, w_in_ref, b_in_ref,
                    w_h_ref, b_h_ref, w_out_ref, b_out_ref, out_ref,
                    *, approx_recip=True):
    """One batch tile of the full forward pass.

    obs_ref    [TB, L*D]   f32 or bf16, lane-dense (wrapper reshape of [B, L, D])
    mask_ref   [TB, L]     int8, 1 = masked limb
    expand_ref [L, L*D]    f32 constant, expand[l, j] = 1 iff j // D == l
    w_in_ref   [L*D, H]    flattened per-limb input weights
    b_in_ref   [L, H]
    w_h_ref    [NH, H, H], b_h_ref [NH, H]
    w_out_ref  [H, L*O]    flattened per-limb output weights (true width, no padding)
    b_out_ref  [1, L*O]
    out_ref    [TB, L*O]
    """
    # valid = 1 - mask (mask streamed as int8; cast is free VPU work under the DMA bound).
    valid = 1.0 - mask_ref[...].astype(jnp.float32)                       # [TB, L]

    # obs may arrive bf16 (halves input HBM bytes); upcast once for the VPU scale.
    obs = obs_ref[...].astype(jnp.float32)                                # [TB, L*D]

    # Expand valid [TB, L] -> per-lane scale [TB, L*D] with a tiny constant matmul
    # (hoisted constant; avoids lane gathers / 3-D relayouts).
    scale = jnp.dot(valid, expand_ref[...], preferred_element_type=jnp.float32)   # [TB, L*D]

    # Fused masked per-limb input projection: single K = L*D contraction on the MXU
    # (instead of L tiny [TB, D] @ [D, H] dots), plus the masked bias sum.
    acc = jnp.dot(obs * scale, w_in_ref[...], preferred_element_type=jnp.float32)  # [TB, H]
    acc = acc + jnp.dot(valid, b_in_ref[...], preferred_element_type=jnp.float32)

    # Mean over valid limbs + ReLU.  denom == 0 only if *every* limb is masked, which
    # would NaN in the PyTorch reference as well (caller invariant; not guarded here).
    denom = jnp.sum(valid, axis=-1, keepdims=True)                        # [TB, 1]
    if approx_recip:
        emb = acc * pl.reciprocal(denom, approx=True)                     # EUP slot (idle otherwise)
    else:
        emb = acc / denom                                                 # exact path for validation
    emb = jnp.maximum(emb, 0.0)

    # Hidden layers: NH static & tiny -> fully unrolled; index through the ref so the
    # 3-D weight slab is never materialized/relaid-out per tile.
    for i in range(w_h_ref.shape[0]):
        emb = jnp.maximum(
            jnp.dot(emb, w_h_ref[i], preferred_element_type=jnp.float32)
            + b_h_ref[i:i + 1, :],
            0.0)

    # True-width output projection; no zero-padded lanes ever hit HBM.
    out = jnp.dot(emb, w_out_ref[...], preferred_element_type=jnp.float32) + b_out_ref[...]
    out_ref[...] = out.astype(out_ref.dtype)                              # [TB, L*O]


def prepare_params(params):
    """One-time parameter preprocessing, hoisted out of the per-call forward path."""
    L, D, H = params['input_weight'].shape
    NH = params['hidden_weights'].shape[0]
    O = params['output_weight'].shape[-1]

    # expand[l, j] = 1 iff j // D == l   (valid [B, L] @ expand -> per-lane scale [B, L*D])
    row = jnp.arange(L, dtype=jnp.int32)[:, None]
    col = jnp.arange(L * D, dtype=jnp.int32)[None, :] // D
    expand = (row == col).astype(jnp.float32)

    return {
        'L': L, 'D': D, 'H': H, 'NH': NH, 'O': O,
        'expand': expand,
        'w_in_flat': params['input_weight'].reshape(L * D, H),
        'b_in': params['input_bias'],
        'w_h': params['hidden_weights'],
        'b_h': params['hidden_bias'],
        'w_out_flat': jnp.transpose(params['output_weight'], (1, 0, 2)).reshape(H, L * O),
        'b_out_flat': params['output_bias'].reshape(1, L * O),
    }


def _choose_tile_b(B, cap=2048):
    """Batch tile: large enough to amortize ~0.35us/grid-step overhead, >= 2 steps when
    B > 16 so the 'parallel' axis actually shards across both v7x TensorCores, and
    sublane-aligned.  Cap keeps double-buffered obs/mask/out tiles + in-kernel f32
    intermediates (~4 KiB/row total) well inside the explicit 32 MiB VMEM budget on
    v5e / v6e / v7x."""
    if B <= 16:
        return B
    tile = -(-B // 2)                   # cdiv(B, 2): at least two grid steps
    tile = ((tile + 7) // 8) * 8        # sublane multiple
    return min(tile, cap)


def base_mlp_forward(obs, obs_mask, obs_env, prep, *, approx_recip=True):
    """Mirror of BaseMLP.forward(obs, obs_mask, obs_env).

    obs may be float32 or bfloat16 (bf16 halves streamed input HBM bytes)."""
    assert 'hfield' not in obs_env  # TODO(synk): hfield_encoder branch (external module) not implemented
    B, L, D = obs.shape
    H, NH, O = prep['H'], prep['NH'], prep['O']
    LO = L * O

    obs_flat = obs.reshape(B, L * D)               # free row-major reshape -> lane-dense
    mask_i8 = obs_mask.astype(jnp.int8)            # [B, L]: 1 = masked; 4x fewer bytes than f32

    tile_b = _choose_tile_b(B)
    grid = (pl.cdiv(B, tile_b),)

    # Advisory cost hint for XLA's scheduler around this mem-bound custom call.
    flops = 2 * B * (L * (L * D) + (L * D) * H + L * H + NH * H * H + H * LO)
    weight_bytes = 4 * (L * L * D + L * D * H + L * H + NH * H * H + NH * H + H * LO + LO)
    bytes_accessed = (obs_flat.size * obs_flat.dtype.itemsize
                      + mask_i8.size + B * LO * 4 + weight_bytes)

    kernel = functools.partial(base_mlp_kernel, approx_recip=approx_recip)

    out_flat = pl.pallas_call(
        kernel,
        out_shape=jax.ShapeDtypeStruct((B, LO), jnp.float32),
        grid_spec=pltpu.PrefetchScalarGridSpec(
            num_scalar_prefetch=0,
            grid=grid,
            in_specs=[
                pl.BlockSpec((tile_b, L * D), lambda i: (i, 0)),   # obs   (pipelined over B)
                pl.BlockSpec((tile_b, L), lambda i: (i, 0)),       # mask  (pipelined over B)
                pl.BlockSpec((L, L * D), lambda i: (0, 0)),        # expand: VMEM-resident
                pl.BlockSpec((L * D, H), lambda i: (0, 0)),        # weights: VMEM-resident
                pl.BlockSpec((L, H), lambda i: (0, 0)),
                pl.BlockSpec((NH, H, H), lambda i: (0, 0, 0)),
                pl.BlockSpec((NH, H), lambda i: (0, 0)),
                pl.BlockSpec((H, LO), lambda i: (0, 0)),
                pl.BlockSpec((1, LO), lambda i: (0, 0)),
            ],
            out_specs=pl.BlockSpec((tile_b, LO), lambda i: (i, 0)),
        ),
        compiler_params=pltpu.CompilerParams(
            dimension_semantics=("parallel",),         # batch tiles shard across TCs (v7x)
            vmem_limit_bytes=32 * 1024 * 1024,         # explicit (v5e default is only 16 MiB)
        ),
        cost_estimate=pl.CostEstimate(
            flops=flops, transcendentals=B, bytes_accessed=bytes_accessed),
    )(obs_flat, mask_i8, prep['expand'], prep['w_in_flat'], prep['b_in'],
      prep['w_h'], prep['b_h'], prep['w_out_flat'], prep['b_out_flat'])

    return out_flat.reshape(B, L, O)                   # free row-major reshape (no slice pass)


def reference_forward(obs, obs_mask, params):
    """Pure-JAX replica of the PyTorch forward (broadcast/sum formulation)."""
    w_in = params['input_weight'][None]            # [1, L, D, H]
    b_in = params['input_bias'][None]              # [1, L, H]
    emb = (obs[:, :, :, None] * w_in).sum(axis=-2) + b_in
    valid = (1.0 - obs_mask.astype(jnp.float32))
    emb = emb * valid[:, :, None]
    emb = emb.sum(axis=1) / valid.sum(axis=1, keepdims=True)
    emb = jnp.maximum(emb, 0.0)
    for i in range(params['hidden_weights'].shape[0]):
        w = params['hidden_weights'][i][None]      # [1, H, H]
        b = params['hidden_bias'][i][None]         # [1, H]
        emb = (emb[:, :, None] * w).sum(axis=1) + b
        emb = jnp.maximum(emb, 0.0)
    w_out = params['output_weight'][None]          # [1, L, H, O]
    b_out = params['output_bias'][None]            # [1, L, O]
    out = (emb[:, None, :, None] * w_out).sum(axis=-2) + b_out
    return out


if __name__ == "__main__":
    B, L, D, H, O, NH = 2, 8, 16, 32, 2, 2

    key = jax.random.PRNGKey(0)
    ks = jax.random.split(key, 8)
    params = {
        'input_weight':   jax.random.normal(ks[0], (L, D, H), jnp.float32) * 0.1,
        'input_bias':     jax.random.normal(ks[1], (L, H), jnp.float32) * 0.1,
        'hidden_weights': jax.random.normal(ks[2], (NH, H, H), jnp.float32) * 0.1,
        'hidden_bias':    jax.random.normal(ks[3], (NH, H), jnp.float32) * 0.1,
        'output_weight':  jax.random.normal(ks[4], (L, H, O), jnp.float32) * 0.1,
        'output_bias':    jax.random.normal(ks[5], (L, O), jnp.float32) * 0.1,
    }
    obs = jax.random.normal(ks[6], (B, L, D), jnp.float32)
    obs_mask = jax.random.uniform(ks[7], (B, L)) < 0.25
    obs_mask = obs_mask.at[:, 0].set(False)        # keep >= 1 valid limb per batch row
    obs_env = {}

    prep = prepare_params(params)                  # one-time, outside the jitted forward
    fwd = jax.jit(lambda o, m: base_mlp_forward(o, m, obs_env, prep))
    out = jax.block_until_ready(fwd(obs, obs_mask))

    ref = reference_forward(obs, obs_mask, params)
    assert out.shape == (B, L, O)
    err = jnp.max(jnp.abs(out - ref))
    assert jnp.allclose(out, ref, rtol=1e-3, atol=2e-3), f"max abs err {err}"

    # Multi-tile / partial-tile path (grid >= 2, exercises the v7x megacore split).
    B2 = 50
    k2 = jax.random.split(jax.random.PRNGKey(1), 2)
    obs2 = jax.random.normal(k2[0], (B2, L, D), jnp.float32)
    mask2 = jax.random.uniform(k2[1], (B2, L)) < 0.25
    mask2 = mask2.at[:, 0].set(False)
    out2 = jax.block_until_ready(fwd(obs2, mask2))
    ref2 = reference_forward(obs2, mask2, params)
    err2 = jnp.max(jnp.abs(out2 - ref2))
    assert jnp.allclose(out2, ref2, rtol=1e-3, atol=2e-3), f"max abs err {err2}"

    # bf16 activation path (halved input HBM bytes); loose tolerance vs f32 reference.
    out_bf16 = jax.block_until_ready(fwd(obs.astype(jnp.bfloat16), obs_mask))
    assert out_bf16.shape == (B, L, O)
    assert bool(jnp.all(jnp.isfinite(out_bf16)))
    assert jnp.max(jnp.abs(out_bf16.astype(jnp.float32) - ref)) < 5e-2

    print("KERNEL_OK")
</pallas_src>

<mosaic_0001>
module attributes {stable_mosaic.version = 11 : i64} {
  func.func @base_mlp_kernel(%arg0: i32, %arg1: memref<2x128xf32, #tpu.memory_space<vmem>>, %arg2: memref<2x8xi8, #tpu.memory_space<vmem>>, %arg3: memref<8x128xf32, #tpu.memory_space<vmem>>, %arg4: memref<128x32xf32, #tpu.memory_space<vmem>>, %arg5: memref<8x32xf32, #tpu.memory_space<vmem>>, %arg6: memref<2x32x32xf32, #tpu.memory_space<vmem>>, %arg7: memref<2x32xf32, #tpu.memory_space<vmem>>, %arg8: memref<32x16xf32, #tpu.memory_space<vmem>>, %arg9: memref<1x16xf32, #tpu.memory_space<vmem>>, %arg10: memref<2x16xf32, #tpu.memory_space<vmem>>) attributes {dimension_semantics = [#tpu.dimension_semantics<parallel>], iteration_bounds = array<i64: 1>, scalar_prefetch = 0 : i64, scratch_operands = 0 : i64, tpu.core_type = #tpu.core_type<tc>, window_params = [{transform_indices = @transform_0, window_bounds = array<i64: 2, 128>}, {transform_indices = @transform_1, window_bounds = array<i64: 2, 8>}, {pipeline_mode = #tpu.pipeline_mode<synchronous>, transform_indices = @transform_2, window_bounds = array<i64: 8, 128>}, {pipeline_mode = #tpu.pipeline_mode<synchronous>, transform_indices = @transform_3, window_bounds = array<i64: 128, 32>}, {pipeline_mode = #tpu.pipeline_mode<synchronous>, transform_indices = @transform_4, window_bounds = array<i64: 8, 32>}, {pipeline_mode = #tpu.pipeline_mode<synchronous>, transform_indices = @transform_5, window_bounds = array<i64: 2, 32, 32>}, {pipeline_mode = #tpu.pipeline_mode<synchronous>, transform_indices = @transform_6, window_bounds = array<i64: 2, 32>}, {pipeline_mode = #tpu.pipeline_mode<synchronous>, transform_indices = @transform_7, window_bounds = array<i64: 32, 16>}, {pipeline_mode = #tpu.pipeline_mode<synchronous>, transform_indices = @transform_8, window_bounds = array<i64: 1, 16>}, {transform_indices = @transform_9, window_bounds = array<i64: 2, 16>}]} {
    %c0 = arith.constant 0 : index
    %c0_0 = arith.constant 0 : index
    %0 = vector.load %arg2[%c0, %c0_0] : memref<2x8xi8, #tpu.memory_space<vmem>>, vector<2x8xi8>
    %1 = arith.sitofp %0 : vector<2x8xi8> to vector<2x8xf32>
    %cst = arith.constant 1.000000e+00 : f32
    %2 = vector.broadcast %cst : f32 to vector<2x8xf32>
    %3 = arith.subf %2, %1 : vector<2x8xf32>
    %c0_1 = arith.constant 0 : index
    %c0_2 = arith.constant 0 : index
    %4 = vector.load %arg1[%c0_1, %c0_2] : memref<2x128xf32, #tpu.memory_space<vmem>>, vector<2x128xf32>
    %c0_3 = arith.constant 0 : index
    %c0_4 = arith.constant 0 : index
    %5 = vector.load %arg3[%c0_3, %c0_4] : memref<8x128xf32, #tpu.memory_space<vmem>>, vector<8x128xf32>
    %cst_5 = arith.constant dense<0.000000e+00> : vector<2x128xf32>
    %6 = tpu.matmul %3, %5, %cst_5 {dimension_numbers = #tpu.dot_dimension_numbers<[1], [0], [0], [1], [0, 0, 1, 1], [], []>} : vector<2x8xf32>, vector<8x128xf32>, vector<2x128xf32> -> vector<2x128xf32>
    %7 = arith.mulf %4, %6 : vector<2x128xf32>
    %c0_6 = arith.constant 0 : index
    %c0_7 = arith.constant 0 : index
    %8 = vector.load %arg4[%c0_6, %c0_7] : memref<128x32xf32, #tpu.memory_space<vmem>>, vector<128x32xf32>
    %cst_8 = arith.constant dense<0.000000e+00> : vector<2x32xf32>
    %9 = tpu.matmul %7, %8, %cst_8 {dimension_numbers = #tpu.dot_dimension_numbers<[1], [0], [0], [1], [0, 0, 1, 1], [], []>} : vector<2x128xf32>, vector<128x32xf32>, vector<2x32xf32> -> vector<2x32xf32>
    %c0_9 = arith.constant 0 : index
    %c0_10 = arith.constant 0 : index
    %10 = vector.load %arg5[%c0_9, %c0_10] : memref<8x32xf32, #tpu.memory_space<vmem>>, vector<8x32xf32>
    %cst_11 = arith.constant dense<0.000000e+00> : vector<2x32xf32>
    %11 = tpu.matmul %3, %10, %cst_11 {dimension_numbers = #tpu.dot_dimension_numbers<[1], [0], [0], [1], [0, 0, 1, 1], [], []>} : vector<2x8xf32>, vector<8x32xf32>, vector<2x32xf32> -> vector<2x32xf32>
    %12 = arith.addf %9, %11 : vector<2x32xf32>
    %cst_12 = arith.constant dense<0.000000e+00> : vector<2xf32>
    %13 = vector.multi_reduction <add>, %3, %cst_12 [1] : vector<2x8xf32> to vector<2xf32>
    %14 = vector.shape_cast %13 : vector<2xf32> to vector<2x1xf32>
    %15 = tpu.reciprocal %14 {approx = true} : vector<2x1xf32> -> vector<2x1xf32>
    %16 = vector.broadcast %15 : vector<2x1xf32> to vector<2x32xf32>
    %17 = arith.mulf %12, %16 : vector<2x32xf32>
    %cst_13 = arith.constant 0.000000e+00 : f32
    %18 = vector.broadcast %cst_13 : f32 to vector<2x32xf32>
    %19 = arith.maximumf %17, %18 : vector<2x32xf32>
    %c0_14 = arith.constant 0 : index
    %c0_15 = arith.constant 0 : index
    %c0_16 = arith.constant 0 : index
    %20 = vector.load %arg6[%c0_14, %c0_15, %c0_16] : memref<2x32x32xf32, #tpu.memory_space<vmem>>, vector<1x32x32xf32>
    %21 = vector.shape_cast %20 : vector<1x32x32xf32> to vector<32x32xf32>
    %cst_17 = arith.constant dense<0.000000e+00> : vector<2x32xf32>
    %22 = tpu.matmul %19, %21, %cst_17 {dimension_numbers = #tpu.dot_dimension_numbers<[1], [0], [0], [1], [0, 0, 1, 1], [], []>} : vector<2x32xf32>, vector<32x32xf32>, vector<2x32xf32> -> vector<2x32xf32>
    %c0_18 = arith.constant 0 : index
    %c0_19 = arith.constant 0 : index
    %23 = vector.load %arg7[%c0_18, %c0_19] : memref<2x32xf32, #tpu.memory_space<vmem>>, vector<1x32xf32>
    %24 = vector.broadcast %23 : vector<1x32xf32> to vector<2x32xf32>
    %25 = arith.addf %22, %24 : vector<2x32xf32>
    %cst_20 = arith.constant 0.000000e+00 : f32
    %26 = vector.broadcast %cst_20 : f32 to vector<2x32xf32>
    %27 = arith.maximumf %25, %26 : vector<2x32xf32>
    %c1 = arith.constant 1 : index
    %c0_21 = arith.constant 0 : index
    %c0_22 = arith.constant 0 : index
    %28 = vector.load %arg6[%c1, %c0_21, %c0_22] : memref<2x32x32xf32, #tpu.memory_space<vmem>>, vector<1x32x32xf32>
    %29 = vector.shape_cast %28 : vector<1x32x32xf32> to vector<32x32xf32>
    %cst_23 = arith.constant dense<0.000000e+00> : vector<2x32xf32>
    %30 = tpu.matmul %27, %29, %cst_23 {dimension_numbers = #tpu.dot_dimension_numbers<[1], [0], [0], [1], [0, 0, 1, 1], [], []>} : vector<2x32xf32>, vector<32x32xf32>, vector<2x32xf32> -> vector<2x32xf32>
    %c1_24 = arith.constant 1 : index
    %c0_25 = arith.constant 0 : index
    %31 = vector.load %arg7[%c1_24, %c0_25] : memref<2x32xf32, #tpu.memory_space<vmem>>, vector<1x32xf32>
    %32 = vector.broadcast %31 : vector<1x32xf32> to vector<2x32xf32>
    %33 = arith.addf %30, %32 : vector<2x32xf32>
    %cst_26 = arith.constant 0.000000e+00 : f32
    %34 = vector.broadcast %cst_26 : f32 to vector<2x32xf32>
    %35 = arith.maximumf %33, %34 : vector<2x32xf32>
    %c0_27 = arith.constant 0 : index
    %c0_28 = arith.constant 0 : index
    %36 = vector.load %arg8[%c0_27, %c0_28] : memref<32x16xf32, #tpu.memory_space<vmem>>, vector<32x16xf32>
    %cst_29 = arith.constant dense<0.000000e+00> : vector<2x16xf32>
    %37 = tpu.matmul %35, %36, %cst_29 {dimension_numbers = #tpu.dot_dimension_numbers<[1], [0], [0], [1], [0, 0, 1, 1], [], []>} : vector<2x32xf32>, vector<32x16xf32>, vector<2x16xf32> -> vector<2x16xf32>
    %c0_30 = arith.constant 0 : index
    %c0_31 = arith.constant 0 : index
    %38 = vector.load %arg9[%c0_30, %c0_31] : memref<1x16xf32, #tpu.memory_space<vmem>>, vector<1x16xf32>
    %39 = vector.broadcast %38 : vector<1x16xf32> to vector<2x16xf32>
    %40 = arith.addf %37, %39 : vector<2x16xf32>
    %c0_32 = arith.constant 0 : index
    %c0_33 = arith.constant 0 : index
    %41 = vector.load %arg10[%c0_32, %c0_33] : memref<2x16xf32, #tpu.memory_space<vmem>>, vector<2x16xf32>
    tpu.vector_store %arg10[%c0_32, %c0_33], %40 {strides = array<i32>} : memref<2x16xf32, #tpu.memory_space<vmem>>, vector<2x16xf32>,
    return
  }
  func.func @transform_0(%arg0: i32) -> (i32, i32) {
    %c0_i32 = arith.constant 0 : i32
    %c0_i32_0 = arith.constant 0 : i32
    return %arg0, %c0_i32 : i32, i32
  }
  func.func @transform_1(%arg0: i32) -> (i32, i32) {
    %c0_i32 = arith.constant 0 : i32
    %c0_i32_0 = arith.constant 0 : i32
    return %arg0, %c0_i32 : i32, i32
  }
  func.func @transform_2(%arg0: i32) -> (i32, i32) {
    %c0_i32 = arith.constant 0 : i32
    %c0_i32_0 = arith.constant 0 : i32
    %c0_i32_1 = arith.constant 0 : i32
    return %c0_i32, %c0_i32_0 : i32, i32
  }
  func.func @transform_3(%arg0: i32) -> (i32, i32) {
    %c0_i32 = arith.constant 0 : i32
    %c0_i32_0 = arith.constant 0 : i32
    %c0_i32_1 = arith.constant 0 : i32
    return %c0_i32, %c0_i32_0 : i32, i32
  }
  func.func @transform_4(%arg0: i32) -> (i32, i32) {
    %c0_i32 = arith.constant 0 : i32
    %c0_i32_0 = arith.constant 0 : i32
    %c0_i32_1 = arith.constant 0 : i32
    return %c0_i32, %c0_i32_0 : i32, i32
  }
  func.func @transform_5(%arg0: i32) -> (i32, i32, i32) {
    %c0_i32 = arith.constant 0 : i32
    %c0_i32_0 = arith.constant 0 : i32
    %c0_i32_1 = arith.constant 0 : i32
    %c0_i32_2 = arith.constant 0 : i32
    return %c0_i32, %c0_i32_0, %c0_i32_1 : i32, i32, i32
  }
  func.func @transform_6(%arg0: i32) -> (i32, i32) {
    %c0_i32 = arith.constant 0 : i32
    %c0_i32_0 = arith.constant 0 : i32
    %c0_i32_1 = arith.constant 0 : i32
    return %c0_i32, %c0_i32_0 : i32, i32
  }
  func.func @transform_7(%arg0: i32) -> (i32, i32) {
    %c0_i32 = arith.constant 0 : i32
    %c0_i32_0 = arith.constant 0 : i32
    %c0_i32_1 = arith.constant 0 : i32
    return %c0_i32, %c0_i32_0 : i32, i32
  }
  func.func @transform_8(%arg0: i32) -> (i32, i32) {
    %c0_i32 = arith.constant 0 : i32
    %c0_i32_0 = arith.constant 0 : i32
    %c0_i32_1 = arith.constant 0 : i32
    return %c0_i32, %c0_i32_0 : i32, i32
  }
  func.func @transform_9(%arg0: i32) -> (i32, i32) {
    %c0_i32 = arith.constant 0 : i32
    %c0_i32_0 = arith.constant 0 : i32
    return %arg0, %c0_i32 : i32, i32
  }
}

</mosaic_0001>

<llo_original>
// kernel: _lambda_.1
$region0: #{_lambda_.1}
  #allocation0 [shape = 'u32[]', space=smem, size = 0x4, offset = 0x4, fixed_abs, tag = 'smem constant byte address 0x4 - core index']
  #allocation1 [shape = 'u32[144,128]{1,0:T(1,128)}', space=vmem, size = 0x12000, scoped, tag = 'internal scratch']
  %s0 = inlined_call_operand.vmem [shape: f32[2,128], index: 0, kind: input, shape index: {}]
  %s1 = inlined_call_operand.vmem [shape: s8[2,8], index: 1, kind: input, shape index: {}]
  %s2 = inlined_call_operand.hbm [shape: f32[8,128], index: 2, kind: input, shape index: {}]
  %s3 = inlined_call_operand.hbm [shape: f32[128,32], index: 3, kind: input, shape index: {}]
  %s4 = inlined_call_operand.hbm [shape: f32[8,32], index: 4, kind: input, shape index: {}]
  %s5 = inlined_call_operand.hbm [shape: f32[2,32,32], index: 5, kind: input, shape index: {}]
  %s6 = inlined_call_operand.hbm [shape: f32[2,32], index: 6, kind: input, shape index: {}]
  %s7 = inlined_call_operand.vmem [shape: f32[32,16], index: 7, kind: input, shape index: {}]
  %s8 = inlined_call_operand.vmem [shape: f32[1,16], index: 8, kind: input, shape index: {}]
  %s9 = inlined_call_operand.vmem [shape: f32[2,16], index: 9, kind: output, shape index: {}]
  %s10 = sld [smem:[#allocation0]]
  $region66: #{_lambda_.1} parent=0
    _
  %s12 = ssub.s32 1, %s10
  %s13 = scalar_select 0, %s12, %s10
  $region1: #{_lambda_.1} parent=0
    #allocation2 [shape = 'u8[4096]{0}', space=vmem, size = 0x1000, scoped, tag = 'input window, operand 2, single buffered']
    #allocation3 [shape = 's32[1]{0}', space=sflag, size = 0x4, scoped, tag = 'scoped memory for _lambda_.1']
    #allocation4 [shape = 'u8[65536]{0}', space=vmem, size = 0x10000, scoped, tag = 'input window, operand 3, single buffered']
    #allocation5 [shape = 's32[1]{0}', space=sflag, size = 0x4, scoped, tag = 'scoped memory for _lambda_.1']
    #allocation6 [shape = 'u8[4096]{0}', space=vmem, size = 0x1000, scoped, tag = 'input window, operand 4, single buffered']
    #allocation7 [shape = 'u8[32768]{0}', space=vmem, size = 0x8000, scoped, tag = 'input window, operand 5, single buffered']
    #allocation8 [shape = 's32[1]{0}', space=sflag, size = 0x4, scoped, tag = 'scoped memory for _lambda_.1']
    #allocation9 [shape = 'u8[1024]{0}', space=vmem, size = 0x400, scoped, tag = 'input window, operand 6, single buffered']
    %14 = vsyncpa [#allocation3], 0
    %15 = vsyncpa [#allocation5], 0
    %16 = vsyncpa [#allocation8], 0
    // Predicated region
    $region2: #{_lambda_.1} parent=1 // pred_check
      _
    $region3: #{_lambda_.1} parent=1 // pred_check_branch
      %18 = sbr.rel (0) target = $region5
    $region4: #{_lambda_.1} parent=1 // pred_region
      _
    $region5: #{_lambda_.1} parent=1 // pred_fallthru
      _
    // Predicated region
    $region6: #{_lambda_.1} parent=1 // pred_check
      _
    $region7: #{_lambda_.1} parent=1 // pred_check_branch
      %20 = sbr.rel (0) target = $region9
    $region8: #{_lambda_.1} parent=1 // pred_region
      _
    $region9: #{_lambda_.1} parent=1 // pred_fallthru
      _
    // Predicated region
    $region10: #{_lambda_.1} parent=1 // pred_check
      _
    $region11: #{_lambda_.1} parent=1 // pred_check_branch
      %22 = sbr.rel (0) target = $region13
    $region12: #{_lambda_.1} parent=1 // pred_region
      %s24 = ssub.s32 128, 128
      %25 = vsyncadd [#allocation3], %s24
      %s27 = sshll.u32 [#allocation2], 4
      %s28 = int_to_ptr.vmem [resolvable:$true] %s27
      %30 = dma.hbm_to_vmem [thread:$0]  %s2, 128, %s28, [#allocation3]
    $region13: #{_lambda_.1} parent=1 // pred_fallthru
      _
    // Predicated region
    $region14: #{_lambda_.1} parent=1 // pred_check
      _
    $region15: #{_lambda_.1} parent=1 // pred_check_branch
      %32 = sbr.rel (0) target = $region17
    $region16: #{_lambda_.1} parent=1 // pred_region
      %s34 = ssub.s32 2048, 2048
      %35 = vsyncadd [#allocation5], %s34
      %s36 = sshll.u32 [#allocation4], 4
      %s37 = int_to_ptr.vmem [resolvable:$true] %s36
      %42 = dma.hbm_to_vmem [thread:$0]  %s3, 2048, %s37, [#allocation5], 128, 128, 8
    $region17: #{_lambda_.1} parent=1 // pred_fallthru
      _
    // Predicated region
    $region18: #{_lambda_.1} parent=1 // pred_check
      _
    $region19: #{_lambda_.1} parent=1 // pred_check_branch
      %44 = sbr.rel (0) target = $region21
    $region20: #{_lambda_.1} parent=1 // pred_region
      %s46 = ssub.s32 128, 128
      %47 = vsyncadd [#allocation5], %s46
      %s49 = sshll.u32 [#allocation6], 4
      %s50 = int_to_ptr.vmem [resolvable:$true] %s49
      %52 = dma.hbm_to_vmem [thread:$0]  %s4, 128, %s50, [#allocation5]
    $region21: #{_lambda_.1} parent=1 // pred_fallthru
      _
    // Predicated region
    $region22: #{_lambda_.1} parent=1 // pred_check
      _
    $region23: #{_lambda_.1} parent=1 // pred_check_branch
      %54 = sbr.rel (0) target = $region25
    $region24: #{_lambda_.1} parent=1 // pred_region
      %s56 = ssub.s32 1024, 1024
      %57 = vsyncadd [#allocation8], %s56
      %s58 = sshll.u32 [#allocation7], 4
      %s59 = int_to_ptr.vmem [resolvable:$true] %s58
      %64 = dma.hbm_to_vmem [thread:$0]  %s5, 1024, %s59, [#allocation8], 128, 128, 8
    $region25: #{_lambda_.1} parent=1 // pred_fallthru
      _
    // Predicated region
    $region26: #{_lambda_.1} parent=1 // pred_check
      _
    $region27: #{_lambda_.1} parent=1 // pred_check_branch
      %66 = sbr.rel (0) target = $region29
    $region28: #{_lambda_.1} parent=1 // pred_region
      %s68 = ssub.s32 32, 32
      %69 = vsyncadd [#allocation8], %s68
      %s71 = sshll.u32 [#allocation9], 4
      %s72 = int_to_ptr.vmem [resolvable:$true] %s71
      %74 = dma.hbm_to_vmem [thread:$0]  %s6, 32, %s72, [#allocation8]
    $region29: #{_lambda_.1} parent=1 // pred_fallthru
      _
    // Predicated region
    $region30: #{_lambda_.1} parent=1 // pred_check
      _
    $region31: #{_lambda_.1} parent=1 // pred_check_branch
      %76 = sbr.rel (0) target = $region33
    $region32: #{_lambda_.1} parent=1 // pred_region
      _
    $region33: #{_lambda_.1} parent=1 // pred_fallthru
      _
    // Predicated region
    $region34: #{_lambda_.1} parent=1 // pred_check
      _
    $region35: #{_lambda_.1} parent=1 // pred_check_branch
      %78 = sbr.rel (0) target = $region37
    $region36: #{_lambda_.1} parent=1 // pred_region
      _
    $region37: #{_lambda_.1} parent=1 // pred_fallthru
      _
    // Predicated region
    $region38: #{_lambda_.1} parent=1 // pred_check
      _
    $region39: #{_lambda_.1} parent=1 // pred_check_branch
      %80 = sbr.rel (0) target = $region41
    $region40: #{_lambda_.1} parent=1 // pred_region
      %81 = dma.done [#allocation3], 128
    $region41: #{_lambda_.1} parent=1 // pred_fallthru
      _
    // Predicated region
    $region42: #{_lambda_.1} parent=1 // pred_check
      _
    $region43: #{_lambda_.1} parent=1 // pred_check_branch
      %83 = sbr.rel (0) target = $region45
    $region44: #{_lambda_.1} parent=1 // pred_region
      %84 = dma.done [#allocation5], 2048
    $region45: #{_lambda_.1} parent=1 // pred_fallthru
      _
    // Predicated region
    $region46: #{_lambda_.1} parent=1 // pred_check
      _
    $region47: #{_lambda_.1} parent=1 // pred_check_branch
      %86 = sbr.rel (0) target = $region49
    $region48: #{_lambda_.1} parent=1 // pred_region
      %87 = dma.done [#allocation5], 128
    $region49: #{_lambda_.1} parent=1 // pred_fallthru
      _
    // Predicated region
    $region50: #{_lambda_.1} parent=1 // pred_check
      _
    $region51: #{_lambda_.1} parent=1 // pred_check_branch
      %89 = sbr.rel (0) target = $region53
    $region52: #{_lambda_.1} parent=1 // pred_region
      %90 = dma.done [#allocation8], 1024
    $region53: #{_lambda_.1} parent=1 // pred_fallthru
      _
    // Predicated region
    $region54: #{_lambda_.1} parent=1 // pred_check
      _
    $region55: #{_lambda_.1} parent=1 // pred_check_branch
      %92 = sbr.rel (0) target = $region57
    $region56: #{_lambda_.1} parent=1 // pred_region
      %93 = dma.done [#allocation8], 32
    $region57: #{_lambda_.1} parent=1 // pred_fallthru
      _
    %v94 = vld [vmem:[%s1] sm:$0x1]
    %v95 = vunpack.c.0.s8 %v94
    %v96 = vcvt.s32.f32 %v95
    %v97 = vsub.f32 1.0, %v96
    %v98 = vld [vmem:[%s0] sm:$0x3]
    %v99 = vld [vmem:[#allocation2] sm:$0xff]
    %vm100 = vcmask 64512
    %v102 = vsel %vm100, %v97, 0
    %104 = vmatprep.subr.mxu0 0.0
    %105 = vmatpush1.msra.mxu0 0.0
    %106 = vmatprep.subr.mxu0 0.0
    %107 = vmatpush1.msra.mxu0 0.0
    %108 = vmatprep.subr.mxu0 0.0
    %109 = vmatpush1.msra.mxu0 0.0
    %110 = vmatprep.subr.mxu0 0.0
    %111 = vmatpush1.msra.mxu0 0.0
    %112 = vmatprep.subr.mxu0 0.0
    %113 = vmatpush1.msra.mxu0 0.0
    %114 = vmatprep.subr.mxu0 0.0
    %115 = vmatpush1.msra.mxu0 0.0
    %116 = vmatprep.subr.mxu0 0.0
    %117 = vmatpush1.msra.mxu0 0.0
    %118 = vmatprep.subr.mxu0 0.0
    %119 = vmatpush1.msra.mxu0 0.0
    %120 = vmatprep.subr.mxu0 0.0
    %121 = vmatpush1.msra.mxu0 0.0
    %122 = vmatprep.subr.mxu0 0.0
    %123 = vmatpush1.msra.mxu0 0.0
    %124 = vmatprep.subr.mxu0 0.0
    %125 = vmatpush1.msra.mxu0 0.0
    %126 = vmatprep.subr.mxu0 0.0
    %127 = vmatpush1.msra.mxu0 0.0
    %128 = vmatprep.subr.mxu0 0.0
    %129 = vmatpush1.msra.mxu0 0.0
    %130 = vmatprep.subr.mxu0 0.0
    %131 = vmatpush1.msra.mxu0 0.0
    %132 = vmatprep.subr.mxu0 0.0
    %133 = vmatpush1.msra.mxu0 0.0
    %134 = vmatprep.subr.mxu0 0.0
    %135 = vmatpush1.msra.mxu0 %v99
    %136 = vmatprep.subr.mxu0 0.0
    %137 = vmatpush2.msra.mxu0 0.0
    %138 = vmatprep.subr.mxu0 0.0
    %139 = vmatpush2.msra.mxu0 0.0
    %140 = vmatprep.subr.mxu0 0.0
    %141 = vmatpush2.msra.mxu0 0.0
    %142 = vmatprep.subr.mxu0 0.0
    %143 = vmatpush2.msra.mxu0 0.0
    %144 = vmatprep.subr.mxu0 0.0
    %145 = vmatpush2.msra.mxu0 0.0
    %146 = vmatprep.subr.mxu0 0.0
    %147 = vmatpush2.msra.mxu0 0.0
    %148 = vmatprep.subr.mxu0 0.0
    %149 = vmatpush2.msra.mxu0 0.0
    %150 = vmatprep.subr.mxu0 0.0
    %151 = vmatpush2.msra.mxu0 0.0
    %152 = vmatprep.subr.mxu0 0.0
    %153 = vmatpush2.msra.mxu0 0.0
    %154 = vmatprep.subr.mxu0 0.0
    %155 = vmatpush2.msra.mxu0 0.0
    %156 = vmatprep.subr.mxu0 0.0
    %157 = vmatpush2.msra.mxu0 0.0
    %158 = vmatprep.subr.mxu0 0.0
    %159 = vmatpush2.msra.mxu0 0.0
    %160 = vmatprep.subr.mxu0 0.0
    %161 = vmatpush2.msra.mxu0 0.0
    %162 = vmatprep.subr.mxu0 0.0
    %163 = vmatpush2.msra.mxu0 0.0
    %164 = vmatprep.subr.mxu0 0.0
    %165 = vmatpush2.msra.mxu0 0.0
    %166 = vmatprep.subr.mxu0 0.0
    %167 = vmatpush2.msra.mxu0 0.0
    %168 = vmatprep.mubr.f32.mxu0 0.0
    %169 = vmatmul.mubr.f32.gmra.mxu0 %v102
    %v170 = vpop.f32.mrf.mxu0
    %v171 = vadd.f32 0.0, %v170
    %v172 = vpop.f32.mrf.mxu0
    %173 = vdwg.mxu0
    %v174 = vmul.f32 %v98, %v171
    %v175 = vld [vmem:[#allocation4] sm:$0xff]
    %v176 = vld [vmem:[#allocation4 + $0x8] sm:$0xff]
    %v177 = vld [vmem:[#allocation4 + $0x10] sm:$0xff]
    %v178 = vld [vmem:[#allocation4 + $0x18] sm:$0xff]
    %v179 = vld [vmem:[#allocation4 + $0x20] sm:$0xff]
    %v180 = vld [vmem:[#allocation4 + $0x28] sm:$0xff]
    %v181 = vld [vmem:[#allocation4 + $0x30] sm:$0xff]
    %v182 = vld [vmem:[#allocation4 + $0x38] sm:$0xff]
    %v183 = vld [vmem:[#allocation4 + $0x40] sm:$0xff]
    %v184 = vld [vmem:[#allocation4 + $0x48] sm:$0xff]
    %v185 = vld [vmem:[#allocation4 + $0x50] sm:$0xff]
    %v186 = vld [vmem:[#allocation4 + $0x58] sm:$0xff]
    %v187 = vld [vmem:[#allocation4 + $0x60] sm:$0xff]
    %v188 = vld [vmem:[#allocation4 + $0x68] sm:$0xff]
    %v189 = vld [vmem:[#allocation4 + $0x70] sm:$0xff]
    %v190 = vld [vmem:[#allocation4 + $0x78] sm:$0xff]
    %v191 = vld [vmem:[#allocation6] sm:$0xff]
    %192 = vmatprep.subr.mxu0 0.0
    %193 = vmatpush1.msra.mxu0 0.0
    %194 = vmatprep.subr.mxu0 0.0
    %195 = vmatpush1.msra.mxu0 0.0
    %196 = vmatprep.subr.mxu0 0.0
    %197 = vmatpush1.msra.mxu0 0.0
    %198 = vmatprep.subr.mxu0 0.0
    %199 = vmatpush1.msra.mxu0 0.0
    %200 = vmatprep.subr.mxu0 0.0
    %201 = vmatpush1.msra.mxu0 0.0
    %202 = vmatprep.subr.mxu0 0.0
    %203 = vmatpush1.msra.mxu0 0.0
    %204 = vmatprep.subr.mxu0 0.0
    %205 = vmatpush1.msra.mxu0 0.0
    %206 = vmatprep.subr.mxu0 0.0
    %207 = vmatpush1.msra.mxu0 0.0
    %208 = vmatprep.subr.mxu0 0.0
    %209 = vmatpush1.msra.mxu0 0.0
    %210 = vmatprep.subr.mxu0 0.0
    %211 = vmatpush1.msra.mxu0 0.0
    %212 = vmatprep.subr.mxu0 0.0
    %213 = vmatpush1.msra.mxu0 0.0
    %214 = vmatprep.subr.mxu0 0.0
    %215 = vmatpush1.msra.mxu0 0.0
    %216 = vmatprep.subr.mxu0 0.0
    %217 = vmatpush1.msra.mxu0 0.0
    %218 = vmatprep.subr.mxu0 0.0
    %219 = vmatpush1.msra.mxu0 0.0
    %220 = vmatprep.subr.mxu0 0.0
    %221 = vmatpush1.msra.mxu0 0.0
    %222 = vmatprep.subr.mxu0 0.0
    %223 = vmatpush1.msra.mxu0 %v191
    %224 = vmatprep.subr.mxu0 0.0
    %225 = vmatpush2.msra.mxu0 0.0
    %226 = vmatprep.subr.mxu0 0.0
    %227 = vmatpush2.msra.mxu0 0.0
    %228 = vmatprep.subr.mxu0 0.0
    %229 = vmatpush2.msra.mxu0 0.0
    %230 = vmatprep.subr.mxu0 0.0
    %231 = vmatpush2.msra.mxu0 0.0
    %232 = vmatprep.subr.mxu0 0.0
    %233 = vmatpush2.msra.mxu0 0.0
    %234 = vmatprep.subr.mxu0 0.0
    %235 = vmatpush2.msra.mxu0 0.0
    %236 = vmatprep.subr.mxu0 0.0
    %237 = vmatpush2.msra.mxu0 0.0
    %238 = vmatprep.subr.mxu0 0.0
    %239 = vmatpush2.msra.mxu0 0.0
    %240 = vmatprep.subr.mxu0 0.0
    %241 = vmatpush2.msra.mxu0 0.0
    %242 = vmatprep.subr.mxu0 0.0
    %243 = vmatpush2.msra.mxu0 0.0
    %244 = vmatprep.subr.mxu0 0.0
    %245 = vmatpush2.msra.mxu0 0.0
    %246 = vmatprep.subr.mxu0 0.0
    %247 = vmatpush2.msra.mxu0 0.0
    %248 = vmatprep.subr.mxu0 0.0
    %249 = vmatpush2.msra.mxu0 0.0
    %250 = vmatprep.subr.mxu0 0.0
    %251 = vmatpush2.msra.mxu0 0.0
    %252 = vmatprep.subr.mxu0 0.0
    %253 = vmatpush2.msra.mxu0 0.0
    %254 = vmatprep.subr.mxu0 0.0
    %255 = vmatpush2.msra.mxu0 0.0
    %256 = vmatprep.mubr.f32.mxu0 0.0
    %257 = vmatmul.mubr.f32.gmra.mxu0 %v102
    %v258 = vpop.f32.mrf.mxu0
    %v259 = vadd.f32 0.0, %v258
    %v260 = vpop.f32.mrf.mxu0
    %261 = vdwg.mxu0
    %262 = vmatprep.subr.mxu0 0.0
    %263 = vmatpush1.msra.mxu0 %v190
    %264 = vmatprep.subr.mxu0 0.0
    %265 = vmatpush1.msra.mxu0 %v189
    %266 = vmatprep.subr.mxu0 0.0
    %267 = vmatpush1.msra.mxu0 %v188
    %268 = vmatprep.subr.mxu0 0.0
    %269 = vmatpush1.msra.mxu0 %v187
    %270 = vmatprep.subr.mxu0 0.0
    %271 = vmatpush1.msra.mxu0 %v186
    %272 = vmatprep.subr.mxu0 0.0
    %273 = vmatpush1.msra.mxu0 %v185
    %274 = vmatprep.subr.mxu0 0.0
    %275 = vmatpush1.msra.mxu0 %v184
    %276 = vmatprep.subr.mxu0 0.0
    %277 = vmatpush1.msra.mxu0 %v183
    %278 = vmatprep.subr.mxu0 0.0
    %279 = vmatpush1.msra.mxu0 %v182
    %280 = vmatprep.subr.mxu0 0.0
    %281 = vmatpush1.msra.mxu0 %v181
    %282 = vmatprep.subr.mxu0 0.0
    %283 = vmatpush1.msra.mxu0 %v180
    %284 = vmatprep.subr.mxu0 0.0
    %285 = vmatpush1.msra.mxu0 %v179
    %286 = vmatprep.subr.mxu0 0.0
    %287 = vmatpush1.msra.mxu0 %v178
    %288 = vmatprep.subr.mxu0 0.0
    %289 = vmatpush1.msra.mxu0 %v177
    %290 = vmatprep.subr.mxu0 0.0
    %291 = vmatpush1.msra.mxu0 %v176
    %292 = vmatprep.subr.mxu0 0.0
    %293 = vmatpush1.msra.mxu0 %v175
    %294 = vmatprep.subr.mxu0 0.0
    %295 = vmatpush2.msra.mxu0 0.0
    %296 = vmatprep.subr.mxu0 0.0
    %297 = vmatpush2.msra.mxu0 0.0
    %298 = vmatprep.subr.mxu0 0.0
    %299 = vmatpush2.msra.mxu0 0.0
    %300 = vmatprep.subr.mxu0 0.0
    %301 = vmatpush2.msra.mxu0 0.0
    %302 = vmatprep.subr.mxu0 0.0
    %303 = vmatpush2.msra.mxu0 0.0
    %304 = vmatprep.subr.mxu0 0.0
    %305 = vmatpush2.msra.mxu0 0.0
    %306 = vmatprep.subr.mxu0 0.0
    %307 = vmatpush2.msra.mxu0 0.0
    %308 = vmatprep.subr.mxu0 0.0
    %309 = vmatpush2.msra.mxu0 0.0
    %310 = vmatprep.subr.mxu0 0.0
    %311 = vmatpush2.msra.mxu0 0.0
    %312 = vmatprep.subr.mxu0 0.0
    %313 = vmatpush2.msra.mxu0 0.0
    %314 = vmatprep.subr.mxu0 0.0
    %315 = vmatpush2.msra.mxu0 0.0
    %316 = vmatprep.subr.mxu0 0.0
    %317 = vmatpush2.msra.mxu0 0.0
    %318 = vmatprep.subr.mxu0 0.0
    %319 = vmatpush2.msra.mxu0 0.0
    %320 = vmatprep.subr.mxu0 0.0
    %321 = vmatpush2.msra.mxu0 0.0
    %322 = vmatprep.subr.mxu0 0.0
    %323 = vmatpush2.msra.mxu0 0.0
    %324 = vmatprep.subr.mxu0 0.0
    %325 = vmatpush2.msra.mxu0 0.0
    %326 = vmatprep.mubr.f32.mxu0 0.0
    %327 = vmatmul.mubr.f32.gmra.mxu0 %v174
    %v328 = vpop.f32.mrf.mxu0
    %v329 = vadd.f32 %v259, %v328
    %v330 = vpop.f32.mrf.mxu0
    %331 = vdwg.mxu0
    %vm332 = vcmask 58368
    %v333 = vsel %vm332, %v97, 0.0
    %334 = vadd.xlane.f32.xlu0 %v333
    %v335 = vpop.xlane.xlu0 %334
    %v336 = vrcp.pop %v335
    %v337 = vmul.f32 %v329, %v336
    %v338 = vmax.f32 %v337, 0.0
    %v339 = vld [vmem:[#allocation7] sm:$0xff]
    %v340 = vld [vmem:[#allocation7 + $0x8] sm:$0xff]
    %v341 = vld [vmem:[#allocation7 + $0x10] sm:$0xff]
    %v342 = vld [vmem:[#allocation7 + $0x18] sm:$0xff]
    %v343 = vld [vmem:[#allocation9] sm:$0x1]
    %v344 = vlaneseq
    %v345 = vshrl.u32 %v344, 7
    %v346 = vsub.s32 0, %v345
    %v347 = vrot.slane %v343, %v346
    %vm348 = vcmask 261120
    %v350 = vsel %vm348, %v338, 0
    %352 = vmatprep.subr.mxu0 0.0
    %353 = vmatpush1.msra.mxu0 0.0
    %354 = vmatprep.subr.mxu0 0.0
    %355 = vmatpush1.msra.mxu0 0.0
    %356 = vmatprep.subr.mxu0 0.0
    %357 = vmatpush1.msra.mxu0 0.0
    %358 = vmatprep.subr.mxu0 0.0
    %359 = vmatpush1.msra.mxu0 0.0
    %360 = vmatprep.subr.mxu0 0.0
    %361 = vmatpush1.msra.mxu0 0.0
    %362 = vmatprep.subr.mxu0 0.0
    %363 = vmatpush1.msra.mxu0 0.0
    %364 = vmatprep.subr.mxu0 0.0
    %365 = vmatpush1.msra.mxu0 0.0
    %366 = vmatprep.subr.mxu0 0.0
    %367 = vmatpush1.msra.mxu0 0.0
    %368 = vmatprep.subr.mxu0 0.0
    %369 = vmatpush1.msra.mxu0 0.0
    %370 = vmatprep.subr.mxu0 0.0
    %371 = vmatpush1.msra.mxu0 0.0
    %372 = vmatprep.subr.mxu0 0.0
    %373 = vmatpush1.msra.mxu0 0.0
    %374 = vmatprep.subr.mxu0 0.0
    %375 = vmatpush1.msra.mxu0 0.0
    %376 = vmatprep.subr.mxu0 0.0
    %377 = vmatpush1.msra.mxu0 %v342
    %378 = vmatprep.subr.mxu0 0.0
    %379 = vmatpush1.msra.mxu0 %v341
    %380 = vmatprep.subr.mxu0 0.0
    %381 = vmatpush1.msra.mxu0 %v340
    %382 = vmatprep.subr.mxu0 0.0
    %383 = vmatpush1.msra.mxu0 %v339
    %384 = vmatprep.subr.mxu0 0.0
    %385 = vmatpush2.msra.mxu0 0.0
    %386 = vmatprep.subr.mxu0 0.0
    %387 = vmatpush2.msra.mxu0 0.0
    %388 = vmatprep.subr.mxu0 0.0
    %389 = vmatpush2.msra.mxu0 0.0
    %390 = vmatprep.subr.mxu0 0.0
    %391 = vmatpush2.msra.mxu0 0.0
    %392 = vmatprep.subr.mxu0 0.0
    %393 = vmatpush2.msra.mxu0 0.0
    %394 = vmatprep.subr.mxu0 0.0
    %395 = vmatpush2.msra.mxu0 0.0
    %396 = vmatprep.subr.mxu0 0.0
    %397 = vmatpush2.msra.mxu0 0.0
    %398 = vmatprep.subr.mxu0 0.0
    %399 = vmatpush2.msra.mxu0 0.0
    %400 = vmatprep.subr.mxu0 0.0
    %401 = vmatpush2.msra.mxu0 0.0
    %402 = vmatprep.subr.mxu0 0.0
    %403 = vmatpush2.msra.mxu0 0.0
    %404 = vmatprep.subr.mxu0 0.0
    %405 = vmatpush2.msra.mxu0 0.0
    %406 = vmatprep.subr.mxu0 0.0
    %407 = vmatpush2.msra.mxu0 0.0
    %408 = vmatprep.subr.mxu0 0.0
    %409 = vmatpush2.msra.mxu0 0.0
    %410 = vmatprep.subr.mxu0 0.0
    %411 = vmatpush2.msra.mxu0 0.0
    %412 = vmatprep.subr.mxu0 0.0
    %413 = vmatpush2.msra.mxu0 0.0
    %414 = vmatprep.subr.mxu0 0.0
    %415 = vmatpush2.msra.mxu0 0.0
    %416 = vmatprep.mubr.f32.mxu0 0.0
    %417 = vmatmul.mubr.f32.gmra.mxu0 %v350
    %v418 = vpop.f32.mrf.mxu0
    %v419 = vadd.f32 %v347, %v418
    %v420 = vpop.f32.mrf.mxu0
    %421 = vdwg.mxu0
    %v422 = vmax.f32 %v419, 0.0
    %s423 = scalar_lea.vmem [#allocation7], 32
    %v424 = vld [vmem:[%s423] sm:$0xff]
    %v425 = vld [vmem:[%s423 + $0x8] sm:$0xff]
    %v426 = vld [vmem:[%s423 + $0x10] sm:$0xff]
    %v427 = vld [vmem:[%s423 + $0x18] sm:$0xff]
    %v428 = vld [vmem:[#allocation9 + $0x1] sm:$0x1]
    %v429 = vlaneseq
    %v430 = vshrl.u32 %v429, 7
    %v431 = vsub.s32 0, %v430
    %v432 = vrot.slane %v428, %v431
    %v434 = vsel %vm348, %v422, 0
    %436 = vmatprep.subr.mxu0 0.0
    %437 = vmatpush1.msra.mxu0 0.0
    %438 = vmatprep.subr.mxu0 0.0
    %439 = vmatpush1.msra.mxu0 0.0
    %440 = vmatprep.subr.mxu0 0.0
    %441 = vmatpush1.msra.mxu0 0.0
    %442 = vmatprep.subr.mxu0 0.0
    %443 = vmatpush1.msra.mxu0 0.0
    %444 = vmatprep.subr.mxu0 0.0
    %445 = vmatpush1.msra.mxu0 0.0
    %446 = vmatprep.subr.mxu0 0.0
    %447 = vmatpush1.msra.mxu0 0.0
    %448 = vmatprep.subr.mxu0 0.0
    %449 = vmatpush1.msra.mxu0 0.0
    %450 = vmatprep.subr.mxu0 0.0
    %451 = vmatpush1.msra.mxu0 0.0
    %452 = vmatprep.subr.mxu0 0.0
    %453 = vmatpush1.msra.mxu0 0.0
    %454 = vmatprep.subr.mxu0 0.0
    %455 = vmatpush1.msra.mxu0 0.0
    %456 = vmatprep.subr.mxu0 0.0
    %457 = vmatpush1.msra.mxu0 0.0
    %458 = vmatprep.subr.mxu0 0.0
    %459 = vmatpush1.msra.mxu0 0.0
    %460 = vmatprep.subr.mxu0 0.0
    %461 = vmatpush1.msra.mxu0 %v427
    %462 = vmatprep.subr.mxu0 0.0
    %463 = vmatpush1.msra.mxu0 %v426
    %464 = vmatprep.subr.mxu0 0.0
    %465 = vmatpush1.msra.mxu0 %v425
    %466 = vmatprep.subr.mxu0 0.0
    %467 = vmatpush1.msra.mxu0 %v424
    %468 = vmatprep.subr.mxu0 0.0
    %469 = vmatpush2.msra.mxu0 0.0
    %470 = vmatprep.subr.mxu0 0.0
    %471 = vmatpush2.msra.mxu0 0.0
    %472 = vmatprep.subr.mxu0 0.0
    %473 = vmatpush2.msra.mxu0 0.0
    %474 = vmatprep.subr.mxu0 0.0
    %475 = vmatpush2.msra.mxu0 0.0
    %476 = vmatprep.subr.mxu0 0.0
    %477 = vmatpush2.msra.mxu0 0.0
    %478 = vmatprep.subr.mxu0 0.0
    %479 = vmatpush2.msra.mxu0 0.0
    %480 = vmatprep.subr.mxu0 0.0
    %481 = vmatpush2.msra.mxu0 0.0
    %482 = vmatprep.subr.mxu0 0.0
    %483 = vmatpush2.msra.mxu0 0.0
    %484 = vmatprep.subr.mxu0 0.0
    %485 = vmatpush2.msra.mxu0 0.0
    %486 = vmatprep.subr.mxu0 0.0
    %487 = vmatpush2.msra.mxu0 0.0
    %488 = vmatprep.subr.mxu0 0.0
    %489 = vmatpush2.msra.mxu0 0.0
    %490 = vmatprep.subr.mxu0 0.0
    %491 = vmatpush2.msra.mxu0 0.0
    %492 = vmatprep.subr.mxu0 0.0
    %493 = vmatpush2.msra.mxu0 0.0
    %494 = vmatprep.subr.mxu0 0.0
    %495 = vmatpush2.msra.mxu0 0.0
    %496 = vmatprep.subr.mxu0 0.0
    %497 = vmatpush2.msra.mxu0 0.0
    %498 = vmatprep.subr.mxu0 0.0
    %499 = vmatpush2.msra.mxu0 0.0
    %500 = vmatprep.mubr.f32.mxu0 0.0
    %501 = vmatmul.mubr.f32.gmra.mxu0 %v434
    %v502 = vpop.f32.mrf.mxu0
    %v503 = vadd.f32 %v432, %v502
    %v504 = vpop.f32.mrf.mxu0
    %505 = vdwg.mxu0
    %v506 = vmax.f32 %v503, 0.0
    %v507 = vld [vmem:[%s7] sm:$0xff]
    %v508 = vld [vmem:[%s7 + $0x8] sm:$0xff]
    %v509 = vld [vmem:[%s7 + $0x10] sm:$0xff]
    %v510 = vld [vmem:[%s7 + $0x18] sm:$0xff]
    %v511 = vld [vmem:[%s8] sm:$0x1]
    %v513 = vlaneseq
    %v514 = vshrl.u32 %v513, 7
    %v515 = vsub.s32 0, %v514
    %v516 = vrot.slane %v511, %v515
    %v519 = vsel %vm348, %v506, 0
    %521 = vmatprep.subr.mxu0 0.0
    %522 = vmatpush1.msra.mxu0 0.0
    %523 = vmatprep.subr.mxu0 0.0
    %524 = vmatpush1.msra.mxu0 0.0
    %525 = vmatprep.subr.mxu0 0.0
    %526 = vmatpush1.msra.mxu0 0.0
    %527 = vmatprep.subr.mxu0 0.0
    %528 = vmatpush1.msra.mxu0 0.0
    %529 = vmatprep.subr.mxu0 0.0
    %530 = vmatpush1.msra.mxu0 0.0
    %531 = vmatprep.subr.mxu0 0.0
    %532 = vmatpush1.msra.mxu0 0.0
    %533 = vmatprep.subr.mxu0 0.0
    %534 = vmatpush1.msra.mxu0 0.0
    %535 = vmatprep.subr.mxu0 0.0
    %536 = vmatpush1.msra.mxu0 0.0
    %537 = vmatprep.subr.mxu0 0.0
    %538 = vmatpush1.msra.mxu0 0.0
    %539 = vmatprep.subr.mxu0 0.0
    %540 = vmatpush1.msra.mxu0 0.0
    %541 = vmatprep.subr.mxu0 0.0
    %542 = vmatpush1.msra.mxu0 0.0
    %543 = vmatprep.subr.mxu0 0.0
    %544 = vmatpush1.msra.mxu0 0.0
    %545 = vmatprep.subr.mxu0 0.0
    %546 = vmatpush1.msra.mxu0 %v510
    %547 = vmatprep.subr.mxu0 0.0
    %548 = vmatpush1.msra.mxu0 %v509
    %549 = vmatprep.subr.mxu0 0.0
    %550 = vmatpush1.msra.mxu0 %v508
    %551 = vmatprep.subr.mxu0 0.0
    %552 = vmatpush1.msra.mxu0 %v507
    %553 = vmatprep.subr.mxu0 0.0
    %554 = vmatpush2.msra.mxu0 0.0
    %555 = vmatprep.subr.mxu0 0.0
    %556 = vmatpush2.msra.mxu0 0.0
    %557 = vmatprep.subr.mxu0 0.0
    %558 = vmatpush2.msra.mxu0 0.0
    %559 = vmatprep.subr.mxu0 0.0
    %560 = vmatpush2.msra.mxu0 0.0
    %561 = vmatprep.subr.mxu0 0.0
    %562 = vmatpush2.msra.mxu0 0.0
    %563 = vmatprep.subr.mxu0 0.0
    %564 = vmatpush2.msra.mxu0 0.0
    %565 = vmatprep.subr.mxu0 0.0
    %566 = vmatpush2.msra.mxu0 0.0
    %567 = vmatprep.subr.mxu0 0.0
    %568 = vmatpush2.msra.mxu0 0.0
    %569 = vmatprep.subr.mxu0 0.0
    %570 = vmatpush2.msra.mxu0 0.0
    %571 = vmatprep.subr.mxu0 0.0
    %572 = vmatpush2.msra.mxu0 0.0
    %573 = vmatprep.subr.mxu0 0.0
    %574 = vmatpush2.msra.mxu0 0.0
    %575 = vmatprep.subr.mxu0 0.0
    %576 = vmatpush2.msra.mxu0 0.0
    %577 = vmatprep.subr.mxu0 0.0
    %578 = vmatpush2.msra.mxu0 0.0
    %579 = vmatprep.subr.mxu0 0.0
    %580 = vmatpush2.msra.mxu0 0.0
    %581 = vmatprep.subr.mxu0 0.0
    %582 = vmatpush2.msra.mxu0 0.0
    %583 = vmatprep.subr.mxu0 0.0
    %584 = vmatpush2.msra.mxu0 0.0
    %585 = vmatprep.mubr.f32.mxu0 0.0
    %586 = vmatmul.mubr.f32.gmra.mxu0 %v519
    %v587 = vpop.f32.mrf.mxu0
    %v588 = vadd.f32 %v516, %v587
    %v589 = vpop.f32.mrf.mxu0
    %590 = vdwg.mxu0
    %vm591 = vcmask 123904
    %592 = vst.msk [vmem:[%s9] sm:$0x3] %vm591, %v588
    // Predicated region
    $region58: #{_lambda_.1} parent=1 // pred_check
      _
    $region59: #{_lambda_.1} parent=1 // pred_check_branch
      %594 = sbr.rel (0) target = $region61
    $region60: #{_lambda_.1} parent=1 // pred_region
      _
    $region61: #{_lambda_.1} parent=1 // pred_fallthru
      _
    // Predicated region
    $region62: #{_lambda_.1} parent=1 // pred_check
      _
    $region63: #{_lambda_.1} parent=1 // pred_check_branch
      %596 = sbr.rel (0) target = $region65
    $region64: #{_lambda_.1} parent=1 // pred_region
      _
    $region65: #{_lambda_.1} parent=1 // pred_fallthru
      _
    %597 = vsyncpa [#allocation3], 1
    %598 = vsyncpa [#allocation5], 1
    %599 = vsyncpa [#allocation8], 1

</llo_original>
